<compile_context>
chip_gen: v7x
topology: tpu7x:2x2x1
jax: 0.10.0
libtpu: 0.0.40
codegen_flags: <defaults>
</compile_context>

<pallas_src>
import jax
import jax.numpy as jnp
from jax import lax
from jax.experimental import pallas as pl
from jax.experimental.pallas import tpu as pltpu


# ----------------------------------------------------------------------------
# Pallas kernel: folded conv matmul (BN scale pre-folded into weights)
#                + bias (+ ReLU) (+ residual add)
# ----------------------------------------------------------------------------
def _make_conv_kernel(relu, add_residual):
    def kernel(*refs):
        if add_residual:
            p_ref, w_ref, b_ref, r_ref, o_ref = refs
        else:
            p_ref, w_ref, b_ref, o_ref = refs

        # One wide MXU contraction (all taps — and the fused 1x1 skip, if any —
        # folded into the K dim), f32 accumulation.
        acc = jnp.dot(p_ref[...], w_ref[...], preferred_element_type=jnp.float32)
        y = acc + b_ref[...]                     # folded-BN bias (broadcast over rows)
        if relu:
            y = jnp.maximum(y, 0.0)
        if add_residual:
            y = y + r_ref[...]
        o_ref[...] = y.astype(o_ref.dtype)

    return kernel


# ----------------------------------------------------------------------------
# pallas_call wrapper: tiling, channel padding, dtype casts
# ----------------------------------------------------------------------------
def _round_up(x, m):
    return ((x + m - 1) // m) * m


def _footprint_bytes(tm, ck, cout_p, has_resid, nbuf):
    """Rough per-call VMEM working-set estimate (bf16 operands, f32 out)."""
    patches_b = tm * ck * 2 * nbuf
    w_b = ck * cout_p * 2 * 2            # constant block, conservatively x2
    out_b = tm * cout_p * 4 * 2
    resid_b = tm * cout_p * 4 * 2 if has_resid else 0
    bias_b = cout_p * 4 * 2
    return patches_b + w_b + out_b + resid_b + bias_b


def _choose_tm(m, ck, cout_p, has_resid):
    """~512-row tiles; >= 2 grid steps when m allows (v7x megacore); multiple of 8;
    shrunk if the buffered working set would blow the VMEM budget."""
    if m <= 16:
        return _round_up(m, 8)
    tm = 512
    while tm > 16 and pl.cdiv(m, tm) < 2:
        tm //= 2
    budget = 40 << 20                    # leave headroom under the 48 MiB scoped limit
    while tm > 64 and _footprint_bytes(tm, ck, cout_p, has_resid, 3) > budget:
        tm //= 2
    return tm


def conv_bn_pallas(patches, w_scaled, bias, *, relu=False, residual=None,
                   compute_dtype=jnp.bfloat16, out_dtype=jnp.float32):
    """Fused conv-as-matmul (BN scale folded into weights) + bias (+ReLU) (+residual).

    patches:   (M, CK)   im2col with taps (and optionally the 1x1 skip input) folded
                         into the contraction dim
    w_scaled:  (CK, Cout) conv weights pre-multiplied by the BN scale
    bias:      (1, Cout)  folded-BN bias (f32); may already include the skip-BN bias
    residual:  optional (M, Cout), added after the bias/ReLU (identity skip)
    Returns (M, Cout) in out_dtype.
    """
    M, CK = patches.shape
    Cout = w_scaled.shape[-1]
    Cout_p = _round_up(Cout, 128)        # lane-dense output stores / MXU result width
    TM = _choose_tm(M, CK, Cout_p, residual is not None)
    Mp = _round_up(M, TM)
    grid_m = Mp // TM
    f32 = jnp.float32

    patches = jnp.pad(patches, ((0, Mp - M), (0, 0))).astype(compute_dtype)
    w_scaled = jnp.pad(w_scaled, ((0, 0), (0, Cout_p - Cout))).astype(compute_dtype)
    bias = jnp.pad(bias, ((0, 0), (0, Cout_p - Cout))).astype(f32)

    # Patches stream: deeper pipelining when there are enough grid steps to hide DMA.
    patch_kwargs = {}
    if grid_m >= 3:
        patch_kwargs["pipeline_mode"] = pl.Buffered(3)

    in_specs = [
        pl.BlockSpec((TM, CK), lambda i: (i, 0), **patch_kwargs),
        pl.BlockSpec((CK, Cout_p), lambda i: (0, 0)),
        pl.BlockSpec((1, Cout_p), lambda i: (0, 0)),
    ]
    args = [patches, w_scaled, bias]
    flops = 2 * Mp * CK * Cout_p
    bytes_accessed = (patches.size * patches.dtype.itemsize
                      + w_scaled.size * w_scaled.dtype.itemsize
                      + Mp * Cout_p * jnp.dtype(out_dtype).itemsize)

    add_residual = residual is not None
    if add_residual:
        residual = jnp.pad(residual, ((0, Mp - M), (0, Cout_p - Cout))).astype(f32)
        in_specs.append(pl.BlockSpec((TM, Cout_p), lambda i: (i, 0)))
        args.append(residual)
        bytes_accessed += residual.size * residual.dtype.itemsize

    out = pl.pallas_call(
        _make_conv_kernel(relu, add_residual),
        out_shape=jax.ShapeDtypeStruct((Mp, Cout_p), out_dtype),
        grid=(grid_m,),
        in_specs=in_specs,
        out_specs=pl.BlockSpec((TM, Cout_p), lambda i: (i, 0)),
        compiler_params=pltpu.CompilerParams(
            dimension_semantics=("parallel",),
            # < v7x's 64 MiB physical VMEM, above the 32 MiB scoped default on v6e.
            vmem_limit_bytes=48 << 20,
        ),
        cost_estimate=pl.CostEstimate(flops=flops, transcendentals=0,
                                      bytes_accessed=bytes_accessed),
    )(*args)
    return out[:M, :Cout]


# ----------------------------------------------------------------------------
# Host-side glue: im2col (taps folded into channels), BN folding, ResBlk forward
# ----------------------------------------------------------------------------
def _out_hw(h, stride):
    return (h - 1) // stride + 1  # kernel=3, pad=1


def im2col_3x3(x_nhwc, stride):
    """(N, H, W, C) -> (N*Ho*Wo, 9*C), taps folded into the contraction axis."""
    N, H, W, C = x_nhwc.shape
    Ho, Wo = _out_hw(H, stride), _out_hw(W, stride)
    xp = jnp.pad(x_nhwc, ((0, 0), (1, 1), (1, 1), (0, 0)))
    taps = []
    for dy in range(3):
        for dx in range(3):
            t = xp[:, dy:dy + (Ho - 1) * stride + 1:stride,
                      dx:dx + (Wo - 1) * stride + 1:stride, :]
            taps.append(t.reshape(N * Ho * Wo, C))
    return jnp.concatenate(taps, axis=1)


def fold_bn(conv_bias, gamma, beta, mean, var, eps=1e-5):
    """Returns (scale, bias) such that BN(conv(x)+conv_bias) == conv(x)*scale + bias."""
    s = gamma / jnp.sqrt(var + eps)
    b = (conv_bias - mean) * s + beta
    return s.reshape(1, -1).astype(jnp.float32), b.reshape(1, -1).astype(jnp.float32)


def resblk_forward(x_nchw, params, stride, compute_dtype=jnp.bfloat16):
    """ResBlk forward. x: (N, Cin, H, W) -> (N, Cout, Ho, Wo)."""
    x = jnp.transpose(x_nchw, (0, 2, 3, 1)).astype(jnp.float32)  # NHWC
    N, H, W, Cin = x.shape
    Cout = params["w1"].shape[0]
    Ho, Wo = _out_hw(H, stride), _out_hw(W, stride)
    M = N * Ho * Wo

    # conv1 (3x3, stride) + bn1 + relu — taps folded into one contraction,
    # BN scale folded into the weights.
    w1 = jnp.transpose(params["w1"], (2, 3, 1, 0)).reshape(9 * Cin, Cout)
    s1, b1 = fold_bn(params["b1"], params["g1"], params["be1"], params["m1"], params["v1"])
    out1 = conv_bn_pallas(im2col_3x3(x, stride), w1 * s1, b1, relu=True,
                          compute_dtype=compute_dtype)
    out1 = out1.reshape(N, Ho, Wo, Cout)

    # conv2 (3x3, stride 1) + bn2, with the skip path fused into the same kernel.
    w2 = jnp.transpose(params["w2"], (2, 3, 1, 0)).reshape(9 * Cout, Cout)
    s2, b2 = fold_bn(params["b2"], params["g2"], params["be2"], params["m2"], params["v2"])
    p2 = im2col_3x3(out1, 1)
    xs = x[:, ::stride, ::stride, :].reshape(M, Cin)  # == x when stride == 1

    if Cin != Cout:
        # 1x1-conv+BN skip: fold it into the SAME contraction as conv2 by
        # concatenating along K and summing the two BN biases.
        wsk = jnp.transpose(params["wsk"], (2, 3, 1, 0)).reshape(Cin, Cout)
        ssk, bsk = fold_bn(params["bsk"], params["gsk"], params["besk"],
                           params["msk"], params["vsk"])
        p_cat = jnp.concatenate([p2, xs], axis=1)
        w_cat = jnp.concatenate([w2 * s2, wsk * ssk], axis=0)
        out = conv_bn_pallas(p_cat, w_cat, b2 + bsk, relu=False,
                             compute_dtype=compute_dtype)
    else:
        # identity skip (PyTorch requires stride == 1 here for shapes to match)
        out = conv_bn_pallas(p2, w2 * s2, b2, relu=False, residual=xs,
                             compute_dtype=compute_dtype)

    out = out.reshape(N, Ho, Wo, Cout)
    return jnp.transpose(out, (0, 3, 1, 2))  # back to NCHW


# ----------------------------------------------------------------------------
# Pure-JAX reference (for verification)
# ----------------------------------------------------------------------------
def _conv_ref(x, w, b, stride, pad):
    y = lax.conv_general_dilated(
        x, w, (stride, stride), [(pad, pad), (pad, pad)],
        dimension_numbers=("NCHW", "OIHW", "NCHW"))
    return y + b[None, :, None, None]


def _bn_ref(x, g, be, m, v, eps=1e-5):
    return (x - m[None, :, None, None]) / jnp.sqrt(v[None, :, None, None] + eps) \
        * g[None, :, None, None] + be[None, :, None, None]


def resblk_ref(x, p, stride):
    out = jax.nn.relu(_bn_ref(_conv_ref(x, p["w1"], p["b1"], stride, 1),
                              p["g1"], p["be1"], p["m1"], p["v1"]))
    out = _bn_ref(_conv_ref(out, p["w2"], p["b2"], 1, 1),
                  p["g2"], p["be2"], p["m2"], p["v2"])
    if "wsk" in p:
        skip = _bn_ref(_conv_ref(x, p["wsk"], p["bsk"], stride, 0),
                       p["gsk"], p["besk"], p["msk"], p["vsk"])
    else:
        skip = x  # identity skip (only valid for stride == 1, as in PyTorch)
    return skip + out


# ----------------------------------------------------------------------------
# main
# ----------------------------------------------------------------------------
def init_params(key, ch_in, ch_out):
    ks = jax.random.split(key, 16)
    f32 = jnp.float32
    p = {
        "w1": 0.1 * jax.random.normal(ks[0], (ch_out, ch_in, 3, 3), f32),
        "b1": 0.1 * jax.random.normal(ks[1], (ch_out,), f32),
        "g1": jax.random.uniform(ks[2], (ch_out,), f32, 0.5, 1.5),
        "be1": 0.1 * jax.random.normal(ks[3], (ch_out,), f32),
        "m1": 0.1 * jax.random.normal(ks[4], (ch_out,), f32),
        "v1": jax.random.uniform(ks[5], (ch_out,), f32, 0.5, 1.5),
        "w2": 0.1 * jax.random.normal(ks[6], (ch_out, ch_out, 3, 3), f32),
        "b2": 0.1 * jax.random.normal(ks[7], (ch_out,), f32),
        "g2": jax.random.uniform(ks[8], (ch_out,), f32, 0.5, 1.5),
        "be2": 0.1 * jax.random.normal(ks[9], (ch_out,), f32),
        "m2": 0.1 * jax.random.normal(ks[10], (ch_out,), f32),
        "v2": jax.random.uniform(ks[11], (ch_out,), f32, 0.5, 1.5),
    }
    if ch_in != ch_out:
        p.update({
            "wsk": 0.1 * jax.random.normal(ks[12], (ch_out, ch_in, 1, 1), f32),
            "bsk": 0.1 * jax.random.normal(ks[13], (ch_out,), f32),
            "gsk": jax.random.uniform(ks[14], (ch_out,), f32, 0.5, 1.5),
            "besk": 0.1 * jax.random.normal(ks[15], (ch_out,), f32),
            "msk": 0.05 * jax.random.normal(ks[14], (ch_out,), f32),
            "vsk": jax.random.uniform(ks[15], (ch_out,), f32, 0.5, 1.5),
        })
    return p


if __name__ == "__main__":
    N, CH_IN, CH_OUT, H, W, STRIDE = 2, 4, 8, 16, 16, 1

    key = jax.random.PRNGKey(0)
    kx, kp = jax.random.split(key)
    x = jax.random.normal(kx, (N, CH_IN, H, W), jnp.float32)
    params = init_params(kp, CH_IN, CH_OUT)

    forward = jax.jit(resblk_forward, static_argnums=2)
    out = jax.block_until_ready(forward(x, params, STRIDE))
    ref = jax.block_until_ready(resblk_ref(x, params, STRIDE))

    assert out.shape == ref.shape, f"shape mismatch {out.shape} vs {ref.shape}"
    max_err = float(jnp.max(jnp.abs(out - ref)))
    ref_scale = max(float(jnp.max(jnp.abs(ref))), 1.0)
    # bf16 MXU operands (f32 accumulation) -> tolerance relative to output scale.
    assert max_err <= 5e-2 * ref_scale, f"mismatch vs reference: max_err={max_err}"

    print("KERNEL_OK")
</pallas_src>

<mosaic_0001>
module attributes {stable_mosaic.version = 11 : i64} {
  func.func @kernel(%arg0: i32, %arg1: memref<256x36xbf16, #tpu.memory_space<vmem>>, %arg2: memref<36x128xbf16, #tpu.memory_space<vmem>>, %arg3: memref<1x128xf32, #tpu.memory_space<vmem>>, %arg4: memref<256x128xf32, #tpu.memory_space<vmem>>) attributes {dimension_semantics = [#tpu.dimension_semantics<parallel>], iteration_bounds = array<i64: 2>, scalar_prefetch = 0 : i64, scratch_operands = 0 : i64, tpu.core_type = #tpu.core_type<tc>, window_params = [{transform_indices = @transform_0, window_bounds = array<i64: 256, 36>}, {pipeline_mode = #tpu.pipeline_mode<synchronous>, transform_indices = @transform_1, window_bounds = array<i64: 36, 128>}, {pipeline_mode = #tpu.pipeline_mode<synchronous>, transform_indices = @transform_2, window_bounds = array<i64: 1, 128>}, {transform_indices = @transform_3, window_bounds = array<i64: 256, 128>}]} {
    %c0 = arith.constant 0 : index
    %c0_0 = arith.constant 0 : index
    %0 = vector.load %arg1[%c0, %c0_0] : memref<256x36xbf16, #tpu.memory_space<vmem>>, vector<256x36xbf16>
    %c0_1 = arith.constant 0 : index
    %c0_2 = arith.constant 0 : index
    %1 = vector.load %arg2[%c0_1, %c0_2] : memref<36x128xbf16, #tpu.memory_space<vmem>>, vector<36x128xbf16>
    %cst = arith.constant dense<0.000000e+00> : vector<256x128xf32>
    %2 = tpu.matmul %0, %1, %cst {dimension_numbers = #tpu.dot_dimension_numbers<[1], [0], [0], [1], [0, 0, 1, 1], [], []>} : vector<256x36xbf16>, vector<36x128xbf16>, vector<256x128xf32> -> vector<256x128xf32>
    %c0_3 = arith.constant 0 : index
    %c0_4 = arith.constant 0 : index
    %3 = vector.load %arg3[%c0_3, %c0_4] : memref<1x128xf32, #tpu.memory_space<vmem>>, vector<1x128xf32>
    %4 = vector.broadcast %3 : vector<1x128xf32> to vector<256x128xf32>
    %5 = arith.addf %2, %4 : vector<256x128xf32>
    %cst_5 = arith.constant 0.000000e+00 : f32
    %6 = vector.broadcast %cst_5 : f32 to vector<256x128xf32>
    %7 = arith.maximumf %5, %6 : vector<256x128xf32>
    %c0_6 = arith.constant 0 : index
    %c0_7 = arith.constant 0 : index
    %8 = vector.load %arg4[%c0_6, %c0_7] : memref<256x128xf32, #tpu.memory_space<vmem>>, vector<256x128xf32>
    tpu.vector_store %arg4[%c0_6, %c0_7], %7 {strides = array<i32>} : memref<256x128xf32, #tpu.memory_space<vmem>>, vector<256x128xf32>,
    return
  }
  func.func @transform_0(%arg0: i32) -> (i32, i32) {
    %c0_i32 = arith.constant 0 : i32
    %c0_i32_0 = arith.constant 0 : i32
    return %arg0, %c0_i32 : i32, i32
  }
  func.func @transform_1(%arg0: i32) -> (i32, i32) {
    %c0_i32 = arith.constant 0 : i32
    %c0_i32_0 = arith.constant 0 : i32
    %c0_i32_1 = arith.constant 0 : i32
    return %c0_i32, %c0_i32_0 : i32, i32
  }
  func.func @transform_2(%arg0: i32) -> (i32, i32) {
    %c0_i32 = arith.constant 0 : i32
    %c0_i32_0 = arith.constant 0 : i32
    %c0_i32_1 = arith.constant 0 : i32
    return %c0_i32, %c0_i32_0 : i32, i32
  }
  func.func @transform_3(%arg0: i32) -> (i32, i32) {
    %c0_i32 = arith.constant 0 : i32
    %c0_i32_0 = arith.constant 0 : i32
    return %arg0, %c0_i32 : i32, i32
  }
}

module attributes {stable_mosaic.version = 11 : i64} {
  func.func @kernel(%arg0: i32, %arg1: memref<256x76xbf16, #tpu.memory_space<vmem>>, %arg2: memref<76x128xbf16, #tpu.memory_space<vmem>>, %arg3: memref<1x128xf32, #tpu.memory_space<vmem>>, %arg4: memref<256x128xf32, #tpu.memory_space<vmem>>) attributes {dimension_semantics = [#tpu.dimension_semantics<parallel>], iteration_bounds = array<i64: 2>, scalar_prefetch = 0 : i64, scratch_operands = 0 : i64, tpu.core_type = #tpu.core_type<tc>, window_params = [{transform_indices = @transform_0, window_bounds = array<i64: 256, 76>}, {pipeline_mode = #tpu.pipeline_mode<synchronous>, transform_indices = @transform_1, window_bounds = array<i64: 76, 128>}, {pipeline_mode = #tpu.pipeline_mode<synchronous>, transform_indices = @transform_2, window_bounds = array<i64: 1, 128>}, {transform_indices = @transform_3, window_bounds = array<i64: 256, 128>}]} {
    %c0 = arith.constant 0 : index
    %c0_0 = arith.constant 0 : index
    %0 = vector.load %arg1[%c0, %c0_0] : memref<256x76xbf16, #tpu.memory_space<vmem>>, vector<256x76xbf16>
    %c0_1 = arith.constant 0 : index
    %c0_2 = arith.constant 0 : index
    %1 = vector.load %arg2[%c0_1, %c0_2] : memref<76x128xbf16, #tpu.memory_space<vmem>>, vector<76x128xbf16>
    %cst = arith.constant dense<0.000000e+00> : vector<256x128xf32>
    %2 = tpu.matmul %0, %1, %cst {dimension_numbers = #tpu.dot_dimension_numbers<[1], [0], [0], [1], [0, 0, 1, 1], [], []>} : vector<256x76xbf16>, vector<76x128xbf16>, vector<256x128xf32> -> vector<256x128xf32>
    %c0_3 = arith.constant 0 : index
    %c0_4 = arith.constant 0 : index
    %3 = vector.load %arg3[%c0_3, %c0_4] : memref<1x128xf32, #tpu.memory_space<vmem>>, vector<1x128xf32>
    %4 = vector.broadcast %3 : vector<1x128xf32> to vector<256x128xf32>
    %5 = arith.addf %2, %4 : vector<256x128xf32>
    %c0_5 = arith.constant 0 : index
    %c0_6 = arith.constant 0 : index
    %6 = vector.load %arg4[%c0_5, %c0_6] : memref<256x128xf32, #tpu.memory_space<vmem>>, vector<256x128xf32>
    tpu.vector_store %arg4[%c0_5, %c0_6], %5 {strides = array<i32>} : memref<256x128xf32, #tpu.memory_space<vmem>>, vector<256x128xf32>,
    return
  }
  func.func @transform_0(%arg0: i32) -> (i32, i32) {
    %c0_i32 = arith.constant 0 : i32
    %c0_i32_0 = arith.constant 0 : i32
    return %arg0, %c0_i32 : i32, i32
  }
  func.func @transform_1(%arg0: i32) -> (i32, i32) {
    %c0_i32 = arith.constant 0 : i32
    %c0_i32_0 = arith.constant 0 : i32
    %c0_i32_1 = arith.constant 0 : i32
    return %c0_i32, %c0_i32_0 : i32, i32
  }
  func.func @transform_2(%arg0: i32) -> (i32, i32) {
    %c0_i32 = arith.constant 0 : i32
    %c0_i32_0 = arith.constant 0 : i32
    %c0_i32_1 = arith.constant 0 : i32
    return %c0_i32, %c0_i32_0 : i32, i32
  }
  func.func @transform_3(%arg0: i32) -> (i32, i32) {
    %c0_i32 = arith.constant 0 : i32
    %c0_i32_0 = arith.constant 0 : i32
    return %arg0, %c0_i32 : i32, i32
  }
}

</mosaic_0001>

<llo_original>
// kernel: resblk_forward.2
$region0: #{resblk_forward.2}
  #allocation0 [shape = 'u32[]', space=smem, size = 0x4, offset = 0x4, fixed_abs, tag = 'smem constant byte address 0x4 - core index']
  #allocation1 [shape = 'u32[144,128]{1,0:T(1,128)}', space=vmem, size = 0x12000, scoped, tag = 'internal scratch']
  %s0 = inlined_call_operand.vmem [shape: bf16[512,36], index: 0, kind: input, shape index: {}]
  %s1 = inlined_call_operand.vmem [shape: bf16[36,128], index: 1, kind: input, shape index: {}]
  %s2 = inlined_call_operand.vmem [shape: f32[1,128], index: 2, kind: input, shape index: {}]
  %s3 = inlined_call_operand.vmem [shape: f32[512,128], index: 3, kind: output, shape index: {}]
  %s4 = sld [smem:[#allocation0]]
  $region45: #{resblk_forward.2} parent=0
    _
  %s6 = ssub.s32 1, %s4
  %s7 = scalar_select 0, %s6, %s4
  loop: start=0, step=1, limit=4
  $region2: #{resblk_forward.2} parent=0 // loop_pre_header
    _
  $region3: #{resblk_forward.2} parent=0 // loop_header
    %s9 = sphi 0, %s13
    %p10 = scmp.ge.s32.totalorder %s9, 4
    %s19 = sphi 0, %s21
    %s22 = sphi 0, %s19
    %s23 = sphi 0, %s22
    %s39 = sphi 0, %s23
    %s43 = sphi 0, %s43
    %s45 = sphi 0, %s43
    %s46 = sphi 0, %s45
    %s60 = sphi 0, %s46
    %s64 = sphi 0, %s64
    %s66 = sphi 0, %s64
    %s67 = sphi 0, %s66
    %s81 = sphi 0, %s67
    %s87 = sphi 0, %s89
    %s90 = sphi 0, %s87
    %s91 = sphi 0, %s90
    %s107 = sphi 0, %s91
  $region4: #{resblk_forward.2} parent=0 // loop_header_branch
    %12 = sbr.rel (%p10) target = $region8
  $region5: #{resblk_forward.2} parent=0 // loop_body
    %s14 = ssub.s32 %s9, 1
    %s15 = ssub.s32 %s9, 2
    %s16 = sadd.s32 %s9, 1
    %s17 = ssub.s32 %s9, %s16
    %p18 = scmp.eq.s32.totalorder %s17, 0
    %s20 = sadd.s32 %s19, 1
    %s21 = scalar_select %p18, %s19, %s20
    %p24 = pneg %p18
    %p25 = scmp.eq.s32.totalorder %s9, 1
    %p26 = por %p24, %p25
    %p27 = scmp.ne.s32.totalorder %s19, %s22
    %p28 = scmp.eq.s32.totalorder %s9, 0
    %p29 = por %p27, %p28
    %p30 = scmp.ne.s32.totalorder %s19, %s22
    %p31 = scmp.eq.s32.totalorder %s14, 1
    %p32 = por %p30, %p31
    %p33 = scmp.ne.s32.totalorder %s22, %s23
    %p34 = scmp.eq.s32.totalorder %s14, 0
    %p35 = por %p33, %p34
    %p36 = scmp.ne.s32.totalorder %s22, %s23
    %p37 = scmp.eq.s32.totalorder %s15, 1
    %p38 = por %p36, %p37
    %p40 = scmp.ne.s32.totalorder %s23, %s39
    %p41 = scmp.eq.s32.totalorder %s15, 0
    %p42 = por %p40, %p41
    %s44 = sadd.s32 %s43, 1
    %p47 = scmp.eq.s32.totalorder %s9, 1
    %p48 = scmp.ne.s32.totalorder %s43, %s45
    %p49 = scmp.eq.s32.totalorder %s9, 0
    %p50 = por %p48, %p49
    %p51 = scmp.ne.s32.totalorder %s43, %s45
    %p52 = scmp.eq.s32.totalorder %s14, 1
    %p53 = por %p51, %p52
    %p54 = scmp.ne.s32.totalorder %s45, %s46
    %p55 = scmp.eq.s32.totalorder %s14, 0
    %p56 = por %p54, %p55
    %p57 = scmp.ne.s32.totalorder %s45, %s46
    %p58 = scmp.eq.s32.totalorder %s15, 1
    %p59 = por %p57, %p58
    %p61 = scmp.ne.s32.totalorder %s46, %s60
    %p62 = scmp.eq.s32.totalorder %s15, 0
    %p63 = por %p61, %p62
    %s65 = sadd.s32 %s64, 1
    %p68 = scmp.eq.s32.totalorder %s9, 1
    %p69 = scmp.ne.s32.totalorder %s64, %s66
    %p70 = scmp.eq.s32.totalorder %s9, 0
    %p71 = por %p69, %p70
    %p72 = scmp.ne.s32.totalorder %s64, %s66
    %p73 = scmp.eq.s32.totalorder %s14, 1
    %p74 = por %p72, %p73
    %p75 = scmp.ne.s32.totalorder %s66, %s67
    %p76 = scmp.eq.s32.totalorder %s14, 0
    %p77 = por %p75, %p76
    %p78 = scmp.ne.s32.totalorder %s66, %s67
    %p79 = scmp.eq.s32.totalorder %s15, 1
    %p80 = por %p78, %p79
    %p82 = scmp.ne.s32.totalorder %s67, %s81
    %p83 = scmp.eq.s32.totalorder %s15, 0
    %p84 = por %p82, %p83
    %s85 = ssub.s32 %s9, %s16
    %p86 = scmp.eq.s32.totalorder %s85, 0
    %s88 = sadd.s32 %s87, 1
    %s89 = scalar_select %p86, %s87, %s88
    %p92 = pneg %p86
    %p93 = scmp.eq.s32.totalorder %s9, 1
    %p94 = por %p92, %p93
    %p95 = scmp.ne.s32.totalorder %s87, %s90
    %p96 = scmp.eq.s32.totalorder %s9, 0
    %p97 = por %p95, %p96
    %p98 = scmp.ne.s32.totalorder %s87, %s90
    %p99 = scmp.eq.s32.totalorder %s14, 1
    %p100 = por %p98, %p99
    %p101 = scmp.ne.s32.totalorder %s90, %s91
    %p102 = scmp.eq.s32.totalorder %s14, 0
    %p103 = por %p101, %p102
    %p104 = scmp.ne.s32.totalorder %s90, %s91
    %p105 = scmp.eq.s32.totalorder %s15, 1
    %p106 = por %p104, %p105
    %p108 = scmp.ne.s32.totalorder %s91, %s107
    %p109 = scmp.eq.s32.totalorder %s15, 0
    %p110 = por %p108, %p109
    %p111 = scmp.le.s32.totalorder 1, %s9
    %p112 = scmp.lt.s32.totalorder %s9, 3
    %p113 = pnand %p111, %p112
    %p114 = pneg %p113
    // Predicated region
    $region9: #{resblk_forward.2} parent=5 // pred_check
      _
    $region10: #{resblk_forward.2} parent=5 // pred_check_branch
      %116 = sbr.rel (%p113) target = $region12
    $region11: #{resblk_forward.2} parent=5 // pred_region
      %s117 = ssub.s32 %s9, 1
      // Predicated region
      $region13: #{resblk_forward.2} parent=11 // pred_check
        %p118 = pneg %p56
      $region14: #{resblk_forward.2} parent=11 // pred_check_branch
        %120 = sbr.rel (%p118) target = $region16
      $region15: #{resblk_forward.2} parent=11 // pred_region
        _
      $region16: #{resblk_forward.2} parent=11 // pred_fallthru
        _
      // Predicated region
      $region17: #{resblk_forward.2} parent=11 // pred_check
        %p121 = pneg %p77
      $region18: #{resblk_forward.2} parent=11 // pred_check_branch
        %123 = sbr.rel (%p121) target = $region20
      $region19: #{resblk_forward.2} parent=11 // pred_region
        _
      $region20: #{resblk_forward.2} parent=11 // pred_fallthru
        _
    $region12: #{resblk_forward.2} parent=5 // pred_fallthru
      _
    %p124 = scmp.lt.s32.totalorder %s9, 2
    // Predicated region
    $region21: #{resblk_forward.2} parent=5 // pred_check
      %p125 = pneg %p124
    $region22: #{resblk_forward.2} parent=5 // pred_check_branch
      %127 = sbr.rel (%p125) target = $region24
    $region23: #{resblk_forward.2} parent=5 // pred_region
      // Predicated region
      $region25: #{resblk_forward.2} parent=23 // pred_check
        %p128 = pneg %p29
      $region26: #{resblk_forward.2} parent=23 // pred_check_branch
        %130 = sbr.rel (%p128) target = $region28
      $region27: #{resblk_forward.2} parent=23 // pred_region
        %s131 = smul.u32 32, %s9
        %p132 = scmp.lt.s32.totalorder %s131, 63
        %s133 = scalar_select %p132, %s131, 63
        %s134 = smul.addr %s133, 4
        %s135 = scalar_lea.vmem %s0, %s134
        %s136 = smul.u32 32, %s9
      $region28: #{resblk_forward.2} parent=23 // pred_fallthru
        _
    $region24: #{resblk_forward.2} parent=5 // pred_fallthru
      _
    %p137 = scmp.le.s32.totalorder 1, %s9
    %p138 = scmp.lt.s32.totalorder %s9, 3
    %p139 = pnand %p137, %p138
    %p140 = pneg %p139
    // Predicated region
    $region29: #{resblk_forward.2} parent=5 // pred_check
      _
    $region30: #{resblk_forward.2} parent=5 // pred_check_branch
      %142 = sbr.rel (%p139) target = $region32
    $region31: #{resblk_forward.2} parent=5 // pred_region
      %s143 = ssub.s32 %s9, 1
      %s144 = smul.u32 32, %s14
      %p145 = scmp.lt.s32.totalorder %s144, 63
      %s146 = scalar_select %p145, %s144, 63
      %s147 = smul.addr %s146, 4
      %s148 = scalar_lea.vmem %s0, %s147
      %p149 = pneg %p35
      %p150 = pneg %p32
      %p151 = pneg %p56
      %p152 = pneg %p53
      %p153 = pneg %p77
      %p154 = pneg %p74
      %p155 = pneg %p103
      %p156 = pneg %p100
      %s157 = smul.u32 32, %s14
      %p158 = scmp.lt.s32.totalorder %s157, 63
      %s159 = scalar_select %p158, %s157, 63
      %s160 = smul.addr %s159, 8
      %s161 = scalar_lea.vmem %s3, %s160
      %s162 = smul.u32 32, %s14
      %p163 = scmp.lt.s32.totalorder %s162, 63
      %s164 = scalar_select %p163, %s162, 63
      %s165 = smul.addr %s164, 4
      %s166 = scalar_lea.vmem %s0, %s165
      %s167 = smul.u32 32, %s14
      %s168 = smul.u32 32, %s14
      %p169 = scmp.lt.s32.totalorder %s168, 63
      %s170 = scalar_select %p169, %s168, 63
      %s171 = smul.addr %s170, 8
      %s172 = scalar_lea.vmem %s3, %s171
      %s173 = smul.u32 32, %s14
      %v175 = vld [vmem:[%s166] sm:$0xf]
      %v176 = vld [vmem:[%s166 + $0x4] sm:$0xf]
      %v177 = vld [vmem:[%s166 + $0x8] sm:$0xf]
      %v178 = vld [vmem:[%s166 + $0xc] sm:$0xf]
      %v179 = vld [vmem:[%s166 + $0x10] sm:$0xf]
      %v180 = vld [vmem:[%s166 + $0x14] sm:$0xf]
      %v181 = vld [vmem:[%s166 + $0x18] sm:$0xf]
      %v182 = vld [vmem:[%s166 + $0x1c] sm:$0xf]
      %v183 = vld [vmem:[%s166 + $0x20] sm:$0xf]
      %v184 = vld [vmem:[%s166 + $0x24] sm:$0xf]
      %v185 = vld [vmem:[%s166 + $0x28] sm:$0xf]
      %v186 = vld [vmem:[%s166 + $0x2c] sm:$0xf]
      %v187 = vld [vmem:[%s166 + $0x30] sm:$0xf]
      %v188 = vld [vmem:[%s166 + $0x34] sm:$0xf]
      %v189 = vld [vmem:[%s166 + $0x38] sm:$0xf]
      %v190 = vld [vmem:[%s166 + $0x3c] sm:$0xf]
      %v191 = vld [vmem:[%s166 + $0x40] sm:$0xf]
      %v192 = vld [vmem:[%s166 + $0x44] sm:$0xf]
      %v193 = vld [vmem:[%s166 + $0x48] sm:$0xf]
      %v194 = vld [vmem:[%s166 + $0x4c] sm:$0xf]
      %v195 = vld [vmem:[%s166 + $0x50] sm:$0xf]
      %v196 = vld [vmem:[%s166 + $0x54] sm:$0xf]
      %v197 = vld [vmem:[%s166 + $0x58] sm:$0xf]
      %v198 = vld [vmem:[%s166 + $0x5c] sm:$0xf]
      %v199 = vld [vmem:[%s166 + $0x60] sm:$0xf]
      %v200 = vld [vmem:[%s166 + $0x64] sm:$0xf]
      %v201 = vld [vmem:[%s166 + $0x68] sm:$0xf]
      %v202 = vld [vmem:[%s166 + $0x6c] sm:$0xf]
      %v203 = vld [vmem:[%s166 + $0x70] sm:$0xf]
      %v204 = vld [vmem:[%s166 + $0x74] sm:$0xf]
      %v205 = vld [vmem:[%s166 + $0x78] sm:$0xf]
      %v206 = vld [vmem:[%s166 + $0x7c] sm:$0xf]
      %v207 = vld [vmem:[%s1] sm:$0xf]
      %v208 = vld [vmem:[%s1 + $0x4] sm:$0xf]
      %v209 = vld [vmem:[%s1 + $0x8] sm:$0xf]
      %v210 = vld [vmem:[%s1 + $0xc] sm:$0xf]
      %v211 = vld [vmem:[%s1 + $0x10] sm:$0x3]
      %v212 = vld [vmem:[%s2] sm:$0x1]
      %v214 = vlaneseq
      %v215 = vshrl.u32 %v214, 7
      %v216 = vsub.s32 0, %v215
      %v217 = vrot.slane %v212, %v216
      %v251 = vunpack.c.l.b16 %v175
      %v252 = vunpack.c.l.b16 %v176
      %v253 = vunpack.c.l.b16 %v177
      %v254 = vunpack.c.l.b16 %v178
      %v255 = vunpack.c.l.b16 %v179
      %v256 = vunpack.c.l.b16 %v180
      %v257 = vunpack.c.l.b16 %v181
      %v258 = vunpack.c.l.b16 %v182
      %v259 = vunpack.c.l.b16 %v183
      %v260 = vunpack.c.l.b16 %v184
      %v261 = vunpack.c.l.b16 %v185
      %v262 = vunpack.c.l.b16 %v186
      %v263 = vunpack.c.l.b16 %v187
      %v264 = vunpack.c.l.b16 %v188
      %v265 = vunpack.c.l.b16 %v189
      %v266 = vunpack.c.l.b16 %v190
      %v267 = vunpack.c.l.b16 %v191
      %v268 = vunpack.c.l.b16 %v192
      %v269 = vunpack.c.l.b16 %v193
      %v270 = vunpack.c.l.b16 %v194
      %v271 = vunpack.c.l.b16 %v195
      %v272 = vunpack.c.l.b16 %v196
      %v273 = vunpack.c.l.b16 %v197
      %v274 = vunpack.c.l.b16 %v198
      %v275 = vunpack.c.l.b16 %v199
      %v276 = vunpack.c.l.b16 %v200
      %v277 = vunpack.c.l.b16 %v201
      %v278 = vunpack.c.l.b16 %v202
      %v279 = vunpack.c.l.b16 %v203
      %v280 = vunpack.c.l.b16 %v204
      %v281 = vunpack.c.l.b16 %v205
      %v282 = vunpack.c.l.b16 %v206
      %v283 = vpack.c.b16 %v252, %v251
      %v284 = vpack.c.b16 %v254, %v253
      %v285 = vpack.c.b16 %v256, %v255
      %v286 = vpack.c.b16 %v258, %v257
      %v287 = vpack.c.b16 %v260, %v259
      %v288 = vpack.c.b16 %v262, %v261
      %v289 = vpack.c.b16 %v264, %v263
      %v290 = vpack.c.b16 %v266, %v265
      %v291 = vpack.c.b16 %v268, %v267
      %v292 = vpack.c.b16 %v270, %v269
      %v293 = vpack.c.b16 %v272, %v271
      %v294 = vpack.c.b16 %v274, %v273
      %v295 = vpack.c.b16 %v276, %v275
      %v296 = vpack.c.b16 %v278, %v277
      %v297 = vpack.c.b16 %v280, %v279
      %v298 = vpack.c.b16 %v282, %v281
      %v304 = vunpack.c.l.b16 %v207
      %v305 = vunpack.c.l.b16 %v208
      %v306 = vunpack.c.l.b16 %v209
      %v307 = vunpack.c.l.b16 %v210
      %v308 = vunpack.c.l.b16 %v211
      %v309 = vpack.c.b16 %v305, %v304
      %v310 = vpack.c.b16 %v307, %v306
      %v311 = vpack.c.b16 %v308, %v308
      %vm314 = vcmask 293888
      %v316 = vsel %vm314, %v283, 0
      %v319 = vsel %vm314, %v284, 0
      %v322 = vsel %vm314, %v285, 0
      %v325 = vsel %vm314, %v286, 0
      %v328 = vsel %vm314, %v287, 0
      %v331 = vsel %vm314, %v288, 0
      %v334 = vsel %vm314, %v289, 0
      %v337 = vsel %vm314, %v290, 0
      %v340 = vsel %vm314, %v291, 0
      %v343 = vsel %vm314, %v292, 0
      %v346 = vsel %vm314, %v293, 0
      %v349 = vsel %vm314, %v294, 0
      %v352 = vsel %vm314, %v295, 0
      %v355 = vsel %vm314, %v296, 0
      %v358 = vsel %vm314, %v297, 0
      %v361 = vsel %vm314, %v298, 0
      %vm363 = vcmask 1041408
      %v365 = vsel %vm363, %v311, 0
      %367 = vmatprep.subr.bf16.mxu0 0
      %368 = vmatpush1.bf16.msra.mxu0 %v309
      %369 = vmatprep.subr.bf16.mxu0 0
      %370 = vmatpush1.bf16.msra.mxu0 %v310
      %371 = vmatprep.subr.bf16.mxu0 0
      %372 = vmatpush1.bf16.msra.mxu0 %v365
      %373 = vmatprep.subr.bf16.mxu0 0
      %374 = vmatpush1.bf16.msra.mxu0 0
      %375 = vmatprep.subr.bf16.mxu0 0
      %376 = vmatpush1.bf16.msra.mxu0 0
      %377 = vmatprep.subr.bf16.mxu0 0
      %378 = vmatpush1.bf16.msra.mxu0 0
      %379 = vmatprep.subr.bf16.mxu0 0
      %380 = vmatpush1.bf16.msra.mxu0 0
      %381 = vmatprep.subr.bf16.mxu0 0
      %382 = vmatpush1.bf16.msra.mxu0 0
      %383 = vmatprep.subr.bf16.mxu0 0
      %384 = vmatpush1.bf16.msra.mxu0 0
      %385 = vmatprep.subr.bf16.mxu0 0
      %386 = vmatpush1.bf16.msra.mxu0 0
      %387 = vmatprep.subr.bf16.mxu0 0
      %388 = vmatpush1.bf16.msra.mxu0 0
      %389 = vmatprep.subr.bf16.mxu0 0
      %390 = vmatpush1.bf16.msra.mxu0 0
      %391 = vmatprep.subr.bf16.mxu0 0
      %392 = vmatpush1.bf16.msra.mxu0 0
      %393 = vmatprep.subr.bf16.mxu0 0
      %394 = vmatpush1.bf16.msra.mxu0 0
      %395 = vmatprep.subr.bf16.mxu0 0
      %396 = vmatpush1.bf16.msra.mxu0 0
      %397 = vmatprep.subr.bf16.mxu0 0
      %398 = vmatpush1.bf16.msra.mxu0 0
      %399 = vmatprep.mubr.bf16.mxu0 0
      %400 = vmatmul.mubr.bf16.gmra.mrb[0].mxu0 %v316
      %v401 = vpop.f32.mrb[0].mxu0
      %v402 = vadd.f32 %v217, %v401
      %v403 = vpop.f32.mrb[0].mxu0
      %v404 = vpop.f32.mrb[0].mxu0
      %v405 = vadd.f32 %v217, %v404
      %v406 = vpop.f32.mrb[0].mxu0
      %407 = vmatprep.mubr.bf16.mxu0 0
      %408 = vmatmul.mubr.bf16.gmra.mrb[0].mxu0 %v319
      %v409 = vpop.f32.mrb[0].mxu0
      %v410 = vadd.f32 %v217, %v409
      %v411 = vpop.f32.mrb[0].mxu0
      %v412 = vpop.f32.mrb[0].mxu0
      %v413 = vadd.f32 %v217, %v412
      %v414 = vpop.f32.mrb[0].mxu0
      %415 = vmatprep.mubr.bf16.mxu0 0
      %416 = vmatmul.mubr.bf16.gmra.mrb[0].mxu0 %v322
      %v417 = vpop.f32.mrb[0].mxu0
      %v418 = vadd.f32 %v217, %v417
      %v419 = vpop.f32.mrb[0].mxu0
      %v420 = vpop.f32.mrb[0].mxu0
      %v421 = vadd.f32 %v217, %v420
      %v422 = vpop.f32.mrb[0].mxu0
      %423 = vmatprep.mubr.bf16.mxu0 0
      %424 = vmatmul.mubr.bf16.gmra.mrb[0].mxu0 %v325
      %v425 = vpop.f32.mrb[0].mxu0
      %v426 = vadd.f32 %v217, %v425
      %v427 = vpop.f32.mrb[0].mxu0
      %v428 = vpop.f32.mrb[0].mxu0
      %v429 = vadd.f32 %v217, %v428
      %v430 = vpop.f32.mrb[0].mxu0
      %431 = vmatprep.mubr.bf16.mxu0 0
      %432 = vmatmul.mubr.bf16.gmra.mrb[0].mxu0 %v328
      %v433 = vpop.f32.mrb[0].mxu0
      %v434 = vadd.f32 %v217, %v433
      %v435 = vpop.f32.mrb[0].mxu0
      %v436 = vpop.f32.mrb[0].mxu0
      %v437 = vadd.f32 %v217, %v436
      %v438 = vpop.f32.mrb[0].mxu0
      %439 = vmatprep.mubr.bf16.mxu0 0
      %440 = vmatmul.mubr.bf16.gmra.mrb[0].mxu0 %v331
      %v441 = vpop.f32.mrb[0].mxu0
      %v442 = vadd.f32 %v217, %v441
      %v443 = vpop.f32.mrb[0].mxu0
      %v444 = vpop.f32.mrb[0].mxu0
      %v445 = vadd.f32 %v217, %v444
      %v446 = vpop.f32.mrb[0].mxu0
      %447 = vmatprep.mubr.bf16.mxu0 0
      %448 = vmatmul.mubr.bf16.gmra.mrb[0].mxu0 %v334
      %v449 = vpop.f32.mrb[0].mxu0
      %v450 = vadd.f32 %v217, %v449
      %v451 = vpop.f32.mrb[0].mxu0
      %v452 = vpop.f32.mrb[0].mxu0
      %v453 = vadd.f32 %v217, %v452
      %v454 = vpop.f32.mrb[0].mxu0
      %455 = vmatprep.mubr.bf16.mxu0 0
      %456 = vmatmul.mubr.bf16.gmra.mrb[0].mxu0 %v337
      %v457 = vpop.f32.mrb[0].mxu0
      %v458 = vadd.f32 %v217, %v457
      %v459 = vpop.f32.mrb[0].mxu0
      %v460 = vpop.f32.mrb[0].mxu0
      %v461 = vadd.f32 %v217, %v460
      %v462 = vpop.f32.mrb[0].mxu0
      %463 = vmatprep.mubr.bf16.mxu0 0
      %464 = vmatmul.mubr.bf16.gmra.mrb[0].mxu0 %v340
      %v465 = vpop.f32.mrb[0].mxu0
      %v466 = vadd.f32 %v217, %v465
      %v467 = vpop.f32.mrb[0].mxu0
      %v468 = vpop.f32.mrb[0].mxu0
      %v469 = vadd.f32 %v217, %v468
      %v470 = vpop.f32.mrb[0].mxu0
      %471 = vmatprep.mubr.bf16.mxu0 0
      %472 = vmatmul.mubr.bf16.gmra.mrb[0].mxu0 %v343
      %v473 = vpop.f32.mrb[0].mxu0
      %v474 = vadd.f32 %v217, %v473
      %v475 = vpop.f32.mrb[0].mxu0
      %v476 = vpop.f32.mrb[0].mxu0
      %v477 = vadd.f32 %v217, %v476
      %v478 = vpop.f32.mrb[0].mxu0
      %479 = vmatprep.mubr.bf16.mxu0 0
      %480 = vmatmul.mubr.bf16.gmra.mrb[0].mxu0 %v346
      %v481 = vpop.f32.mrb[0].mxu0
      %v482 = vadd.f32 %v217, %v481
      %v483 = vpop.f32.mrb[0].mxu0
      %v484 = vpop.f32.mrb[0].mxu0
      %v485 = vadd.f32 %v217, %v484
      %v486 = vpop.f32.mrb[0].mxu0
      %487 = vmatprep.mubr.bf16.mxu0 0
      %488 = vmatmul.mubr.bf16.gmra.mrb[0].mxu0 %v349
      %v489 = vpop.f32.mrb[0].mxu0
      %v490 = vadd.f32 %v217, %v489
      %v491 = vpop.f32.mrb[0].mxu0
      %v492 = vpop.f32.mrb[0].mxu0
      %v493 = vadd.f32 %v217, %v492
      %v494 = vpop.f32.mrb[0].mxu0
      %495 = vmatprep.mubr.bf16.mxu0 0
      %496 = vmatmul.mubr.bf16.gmra.mrb[0].mxu0 %v352
      %v497 = vpop.f32.mrb[0].mxu0
      %v498 = vadd.f32 %v217, %v497
      %v499 = vpop.f32.mrb[0].mxu0
      %v500 = vpop.f32.mrb[0].mxu0
      %v501 = vadd.f32 %v217, %v500
      %v502 = vpop.f32.mrb[0].mxu0
      %503 = vmatprep.mubr.bf16.mxu0 0
      %504 = vmatmul.mubr.bf16.gmra.mrb[0].mxu0 %v355
      %v505 = vpop.f32.mrb[0].mxu0
      %v506 = vadd.f32 %v217, %v505
      %v507 = vpop.f32.mrb[0].mxu0
      %v508 = vpop.f32.mrb[0].mxu0
      %v509 = vadd.f32 %v217, %v508
      %v510 = vpop.f32.mrb[0].mxu0
      %511 = vmatprep.mubr.bf16.mxu0 0
      %512 = vmatmul.mubr.bf16.gmra.mrb[0].mxu0 %v358
      %v513 = vpop.f32.mrb[0].mxu0
      %v514 = vadd.f32 %v217, %v513
      %v515 = vpop.f32.mrb[0].mxu0
      %v516 = vpop.f32.mrb[0].mxu0
      %v517 = vadd.f32 %v217, %v516
      %v518 = vpop.f32.mrb[0].mxu0
      %519 = vmatprep.mubr.bf16.mxu0 0
      %520 = vmatmul.mubr.bf16.gmra.mrb[0].mxu0 %v361
      %v521 = vpop.f32.mrb[0].mxu0
      %v522 = vadd.f32 %v217, %v521
      %v523 = vpop.f32.mrb[0].mxu0
      %v524 = vpop.f32.mrb[0].mxu0
      %v525 = vadd.f32 %v217, %v524
      %v526 = vpop.f32.mrb[0].mxu0
      %527 = vdwg.mxu0
      %v528 = vmax.f32 %v402, 0.0
      %v529 = vmax.f32 %v405, 0.0
      %v530 = vmax.f32 %v410, 0.0
      %v531 = vmax.f32 %v413, 0.0
      %v532 = vmax.f32 %v418, 0.0
      %v533 = vmax.f32 %v421, 0.0
      %v534 = vmax.f32 %v426, 0.0
      %v535 = vmax.f32 %v429, 0.0
      %v536 = vmax.f32 %v434, 0.0
      %v537 = vmax.f32 %v437, 0.0
      %v538 = vmax.f32 %v442, 0.0
      %v539 = vmax.f32 %v445, 0.0
      %v540 = vmax.f32 %v450, 0.0
      %v541 = vmax.f32 %v453, 0.0
      %v542 = vmax.f32 %v458, 0.0
      %v543 = vmax.f32 %v461, 0.0
      %v544 = vmax.f32 %v466, 0.0
      %v545 = vmax.f32 %v469, 0.0
      %v546 = vmax.f32 %v474, 0.0
      %v547 = vmax.f32 %v477, 0.0
      %v548 = vmax.f32 %v482, 0.0
      %v549 = vmax.f32 %v485, 0.0
      %v550 = vmax.f32 %v490, 0.0
      %v551 = vmax.f32 %v493, 0.0
      %v552 = vmax.f32 %v498, 0.0
      %v553 = vmax.f32 %v501, 0.0
      %v554 = vmax.f32 %v506, 0.0
      %v555 = vmax.f32 %v509, 0.0
      %v556 = vmax.f32 %v514, 0.0
      %v557 = vmax.f32 %v517, 0.0
      %v558 = vmax.f32 %v522, 0.0
      %v559 = vmax.f32 %v525, 0.0
      %560 = vst [vmem:[%s172] sm:$0xff] %v528
      %561 = vst [vmem:[%s172 + $0x8] sm:$0xff] %v529
      %562 = vst [vmem:[%s172 + $0x10] sm:$0xff] %v530
      %563 = vst [vmem:[%s172 + $0x18] sm:$0xff] %v531
      %564 = vst [vmem:[%s172 + $0x20] sm:$0xff] %v532
      %565 = vst [vmem:[%s172 + $0x28] sm:$0xff] %v533
      %566 = vst [vmem:[%s172 + $0x30] sm:$0xff] %v534
      %567 = vst [vmem:[%s172 + $0x38] sm:$0xff] %v535
      %568 = vst [vmem:[%s172 + $0x40] sm:$0xff] %v536
      %569 = vst [vmem:[%s172 + $0x48] sm:$0xff] %v537
      %570 = vst [vmem:[%s172 + $0x50] sm:$0xff] %v538
      %571 = vst [vmem:[%s172 + $0x58] sm:$0xff] %v539
      %572 = vst [vmem:[%s172 + $0x60] sm:$0xff] %v540
      %573 = vst [vmem:[%s172 + $0x68] sm:$0xff] %v541
      %574 = vst [vmem:[%s172 + $0x70] sm:$0xff] %v542
      %575 = vst [vmem:[%s172 + $0x78] sm:$0xff] %v543
      %576 = vst [vmem:[%s172 + $0x80] sm:$0xff] %v544
      %577 = vst [vmem:[%s172 + $0x88] sm:$0xff] %v545
      %578 = vst [vmem:[%s172 + $0x90] sm:$0xff] %v546
      %579 = vst [vmem:[%s172 + $0x98] sm:$0xff] %v547
      %580 = vst [vmem:[%s172 + $0xa0] sm:$0xff] %v548
      %581 = vst [vmem:[%s172 + $0xa8] sm:$0xff] %v549
      %582 = vst [vmem:[%s172 + $0xb0] sm:$0xff] %v550
      %583 = vst [vmem:[%s172 + $0xb8] sm:$0xff] %v551
      %584 = vst [vmem:[%s172 + $0xc0] sm:$0xff] %v552
      %585 = vst [vmem:[%s172 + $0xc8] sm:$0xff] %v553
      %586 = vst [vmem:[%s172 + $0xd0] sm:$0xff] %v554
      %587 = vst [vmem:[%s172 + $0xd8] sm:$0xff] %v555
      %588 = vst [vmem:[%s172 + $0xe0] sm:$0xff] %v556
      %589 = vst [vmem:[%s172 + $0xe8] sm:$0xff] %v557
      %590 = vst [vmem:[%s172 + $0xf0] sm:$0xff] %v558
      %591 = vst [vmem:[%s172 + $0xf8] sm:$0xff] %v559
      %s592 = smul.u32 32, %s14
      %p593 = scmp.lt.s32.totalorder %s592, 63
      %s594 = scalar_select %p593, %s592, 63
      %s595 = smul.addr %s594, 8
      %s596 = scalar_lea.vmem %s3, %s595
      // Predicated region
      $region33: #{resblk_forward.2} parent=31 // pred_check
        %p597 = pneg %p100
      $region34: #{resblk_forward.2} parent=31 // pred_check_branch
        %599 = sbr.rel (%p597) target = $region36
      $region35: #{resblk_forward.2} parent=31 // pred_region
        %s600 = smul.u32 32, %s14
      $region36: #{resblk_forward.2} parent=31 // pred_fallthru
        _
    $region32: #{resblk_forward.2} parent=5 // pred_fallthru
      _
    %p601 = scmp.le.s32.totalorder 2, %s9
    // Predicated region
    $region37: #{resblk_forward.2} parent=5 // pred_check
      %p602 = pneg %p601
    $region38: #{resblk_forward.2} parent=5 // pred_check_branch
      %604 = sbr.rel (%p602) target = $region40
    $region39: #{resblk_forward.2} parent=5 // pred_region
      %s605 = ssub.s32 %s9, 2
      // Predicated region
      $region41: #{resblk_forward.2} parent=39 // pred_check
        %p606 = pneg %p106
      $region42: #{resblk_forward.2} parent=39 // pred_check_branch
        %608 = sbr.rel (%p606) target = $region44
      $region43: #{resblk_forward.2} parent=39 // pred_region
        %s609 = smul.u32 32, %s15
        %p610 = scmp.lt.s32.totalorder %s609, 63
        %s611 = scalar_select %p610, %s609, 63
        %s612 = smul.addr %s611, 8
        %s613 = scalar_lea.vmem %s3, %s612
      $region44: #{resblk_forward.2} parent=39 // pred_fallthru
        _
    $region40: #{resblk_forward.2} parent=5 // pred_fallthru
      _
  $region6: #{resblk_forward.2} parent=0 // loop_footer
    %s13 = sadd.s32 1, %s9
  $region7: #{resblk_forward.2} parent=0 // loop_footer_branch
    %8 = sbr.rel target = $region3
  $region8: #{resblk_forward.2} parent=0 // loop_exit
    _

// kernel: resblk_forward.3
$region0: #{resblk_forward.3}
  #allocation0 [shape = 'u32[]', space=smem, size = 0x4, offset = 0x4, fixed_abs, tag = 'smem constant byte address 0x4 - core index']
  #allocation1 [shape = 'u32[144,128]{1,0:T(1,128)}', space=vmem, size = 0x12000, scoped, tag = 'internal scratch']
  %s0 = inlined_call_operand.vmem [shape: bf16[512,76], index: 0, kind: input, shape index: {}]
  %s1 = inlined_call_operand.vmem [shape: bf16[76,128], index: 1, kind: input, shape index: {}]
  %s2 = inlined_call_operand.vmem [shape: f32[1,128], index: 2, kind: input, shape index: {}]
  %s3 = inlined_call_operand.vmem [shape: f32[512,128], index: 3, kind: output, shape index: {}]
  %s4 = sld [smem:[#allocation0]]
  $region45: #{resblk_forward.3} parent=0
    _
  %s6 = ssub.s32 1, %s4
  %s7 = scalar_select 0, %s6, %s4
  loop: start=0, step=1, limit=4
  $region2: #{resblk_forward.3} parent=0 // loop_pre_header
    _
  $region3: #{resblk_forward.3} parent=0 // loop_header
    %s9 = sphi 0, %s13
    %p10 = scmp.ge.s32.totalorder %s9, 4
    %s19 = sphi 0, %s21
    %s22 = sphi 0, %s19
    %s23 = sphi 0, %s22
    %s39 = sphi 0, %s23
    %s43 = sphi 0, %s43
    %s45 = sphi 0, %s43
    %s46 = sphi 0, %s45
    %s60 = sphi 0, %s46
    %s64 = sphi 0, %s64
    %s66 = sphi 0, %s64
    %s67 = sphi 0, %s66
    %s81 = sphi 0, %s67
    %s87 = sphi 0, %s89
    %s90 = sphi 0, %s87
    %s91 = sphi 0, %s90
    %s107 = sphi 0, %s91
  $region4: #{resblk_forward.3} parent=0 // loop_header_branch
    %12 = sbr.rel (%p10) target = $region8
  $region5: #{resblk_forward.3} parent=0 // loop_body
    %s14 = ssub.s32 %s9, 1
    %s15 = ssub.s32 %s9, 2
    %s16 = sadd.s32 %s9, 1
    %s17 = ssub.s32 %s9, %s16
    %p18 = scmp.eq.s32.totalorder %s17, 0
    %s20 = sadd.s32 %s19, 1
    %s21 = scalar_select %p18, %s19, %s20
    %p24 = pneg %p18
    %p25 = scmp.eq.s32.totalorder %s9, 1
    %p26 = por %p24, %p25
    %p27 = scmp.ne.s32.totalorder %s19, %s22
    %p28 = scmp.eq.s32.totalorder %s9, 0
    %p29 = por %p27, %p28
    %p30 = scmp.ne.s32.totalorder %s19, %s22
    %p31 = scmp.eq.s32.totalorder %s14, 1
    %p32 = por %p30, %p31
    %p33 = scmp.ne.s32.totalorder %s22, %s23
    %p34 = scmp.eq.s32.totalorder %s14, 0
    %p35 = por %p33, %p34
    %p36 = scmp.ne.s32.totalorder %s22, %s23
    %p37 = scmp.eq.s32.totalorder %s15, 1
    %p38 = por %p36, %p37
    %p40 = scmp.ne.s32.totalorder %s23, %s39
    %p41 = scmp.eq.s32.totalorder %s15, 0
    %p42 = por %p40, %p41
    %s44 = sadd.s32 %s43, 1
    %p47 = scmp.eq.s32.totalorder %s9, 1
    %p48 = scmp.ne.s32.totalorder %s43, %s45
    %p49 = scmp.eq.s32.totalorder %s9, 0
    %p50 = por %p48, %p49
    %p51 = scmp.ne.s32.totalorder %s43, %s45
    %p52 = scmp.eq.s32.totalorder %s14, 1
    %p53 = por %p51, %p52
    %p54 = scmp.ne.s32.totalorder %s45, %s46
    %p55 = scmp.eq.s32.totalorder %s14, 0
    %p56 = por %p54, %p55
    %p57 = scmp.ne.s32.totalorder %s45, %s46
    %p58 = scmp.eq.s32.totalorder %s15, 1
    %p59 = por %p57, %p58
    %p61 = scmp.ne.s32.totalorder %s46, %s60
    %p62 = scmp.eq.s32.totalorder %s15, 0
    %p63 = por %p61, %p62
    %s65 = sadd.s32 %s64, 1
    %p68 = scmp.eq.s32.totalorder %s9, 1
    %p69 = scmp.ne.s32.totalorder %s64, %s66
    %p70 = scmp.eq.s32.totalorder %s9, 0
    %p71 = por %p69, %p70
    %p72 = scmp.ne.s32.totalorder %s64, %s66
    %p73 = scmp.eq.s32.totalorder %s14, 1
    %p74 = por %p72, %p73
    %p75 = scmp.ne.s32.totalorder %s66, %s67
    %p76 = scmp.eq.s32.totalorder %s14, 0
    %p77 = por %p75, %p76
    %p78 = scmp.ne.s32.totalorder %s66, %s67
    %p79 = scmp.eq.s32.totalorder %s15, 1
    %p80 = por %p78, %p79
    %p82 = scmp.ne.s32.totalorder %s67, %s81
    %p83 = scmp.eq.s32.totalorder %s15, 0
    %p84 = por %p82, %p83
    %s85 = ssub.s32 %s9, %s16
    %p86 = scmp.eq.s32.totalorder %s85, 0
    %s88 = sadd.s32 %s87, 1
    %s89 = scalar_select %p86, %s87, %s88
    %p92 = pneg %p86
    %p93 = scmp.eq.s32.totalorder %s9, 1
    %p94 = por %p92, %p93
    %p95 = scmp.ne.s32.totalorder %s87, %s90
    %p96 = scmp.eq.s32.totalorder %s9, 0
    %p97 = por %p95, %p96
    %p98 = scmp.ne.s32.totalorder %s87, %s90
    %p99 = scmp.eq.s32.totalorder %s14, 1
    %p100 = por %p98, %p99
    %p101 = scmp.ne.s32.totalorder %s90, %s91
    %p102 = scmp.eq.s32.totalorder %s14, 0
    %p103 = por %p101, %p102
    %p104 = scmp.ne.s32.totalorder %s90, %s91
    %p105 = scmp.eq.s32.totalorder %s15, 1
    %p106 = por %p104, %p105
    %p108 = scmp.ne.s32.totalorder %s91, %s107
    %p109 = scmp.eq.s32.totalorder %s15, 0
    %p110 = por %p108, %p109
    %p111 = scmp.le.s32.totalorder 1, %s9
    %p112 = scmp.lt.s32.totalorder %s9, 3
    %p113 = pnand %p111, %p112
    %p114 = pneg %p113
    // Predicated region
    $region9: #{resblk_forward.3} parent=5 // pred_check
      _
    $region10: #{resblk_forward.3} parent=5 // pred_check_branch
      %116 = sbr.rel (%p113) target = $region12
    $region11: #{resblk_forward.3} parent=5 // pred_region
      %s117 = ssub.s32 %s9, 1
      // Predicated region
      $region13: #{resblk_forward.3} parent=11 // pred_check
        %p118 = pneg %p56
      $region14: #{resblk_forward.3} parent=11 // pred_check_branch
        %120 = sbr.rel (%p118) target = $region16
      $region15: #{resblk_forward.3} parent=11 // pred_region
        _
      $region16: #{resblk_forward.3} parent=11 // pred_fallthru
        _
      // Predicated region
      $region17: #{resblk_forward.3} parent=11 // pred_check
        %p121 = pneg %p77
      $region18: #{resblk_forward.3} parent=11 // pred_check_branch
        %123 = sbr.rel (%p121) target = $region20
      $region19: #{resblk_forward.3} parent=11 // pred_region
        _
      $region20: #{resblk_forward.3} parent=11 // pred_fallthru
        _
    $region12: #{resblk_forward.3} parent=5 // pred_fallthru
      _
    %p124 = scmp.lt.s32.totalorder %s9, 2
    // Predicated region
    $region21: #{resblk_forward.3} parent=5 // pred_check
      %p125 = pneg %p124
    $region22: #{resblk_forward.3} parent=5 // pred_check_branch
      %127 = sbr.rel (%p125) target = $region24
    $region23: #{resblk_forward.3} parent=5 // pred_region
      // Predicated region
      $region25: #{resblk_forward.3} parent=23 // pred_check
        %p128 = pneg %p29
      $region26: #{resblk_forward.3} parent=23 // pred_check_branch
        %130 = sbr.rel (%p128) target = $region28
      $region27: #{resblk_forward.3} parent=23 // pred_region
        %s131 = smul.u32 32, %s9
        %p132 = scmp.lt.s32.totalorder %s131, 63
        %s133 = scalar_select %p132, %s131, 63
        %s134 = smul.addr %s133, 4
        %s135 = scalar_lea.vmem %s0, %s134
        %s136 = smul.u32 32, %s9
      $region28: #{resblk_forward.3} parent=23 // pred_fallthru
        _
    $region24: #{resblk_forward.3} parent=5 // pred_fallthru
      _
    %p137 = scmp.le.s32.totalorder 1, %s9
    %p138 = scmp.lt.s32.totalorder %s9, 3
    %p139 = pnand %p137, %p138
    %p140 = pneg %p139
    // Predicated region
    $region29: #{resblk_forward.3} parent=5 // pred_check
      _
    $region30: #{resblk_forward.3} parent=5 // pred_check_branch
      %142 = sbr.rel (%p139) target = $region32
    $region31: #{resblk_forward.3} parent=5 // pred_region
      %s143 = ssub.s32 %s9, 1
      %s144 = smul.u32 32, %s14
      %p145 = scmp.lt.s32.totalorder %s144, 63
      %s146 = scalar_select %p145, %s144, 63
      %s147 = smul.addr %s146, 4
      %s148 = scalar_lea.vmem %s0, %s147
      %p149 = pneg %p35
      %p150 = pneg %p32
      %p151 = pneg %p56
      %p152 = pneg %p53
      %p153 = pneg %p77
      %p154 = pneg %p74
      %p155 = pneg %p103
      %p156 = pneg %p100
      %s157 = smul.u32 32, %s14
      %p158 = scmp.lt.s32.totalorder %s157, 63
      %s159 = scalar_select %p158, %s157, 63
      %s160 = smul.addr %s159, 8
      %s161 = scalar_lea.vmem %s3, %s160
      %s162 = smul.u32 32, %s14
      %p163 = scmp.lt.s32.totalorder %s162, 63
      %s164 = scalar_select %p163, %s162, 63
      %s165 = smul.addr %s164, 4
      %s166 = scalar_lea.vmem %s0, %s165
      %s167 = smul.u32 32, %s14
      %s168 = smul.u32 32, %s14
      %p169 = scmp.lt.s32.totalorder %s168, 63
      %s170 = scalar_select %p169, %s168, 63
      %s171 = smul.addr %s170, 8
      %s172 = scalar_lea.vmem %s3, %s171
      %s173 = smul.u32 32, %s14
      %v175 = vld [vmem:[%s166] sm:$0xf]
      %v176 = vld [vmem:[%s166 + $0x4] sm:$0xf]
      %v177 = vld [vmem:[%s166 + $0x8] sm:$0xf]
      %v178 = vld [vmem:[%s166 + $0xc] sm:$0xf]
      %v179 = vld [vmem:[%s166 + $0x10] sm:$0xf]
      %v180 = vld [vmem:[%s166 + $0x14] sm:$0xf]
      %v181 = vld [vmem:[%s166 + $0x18] sm:$0xf]
      %v182 = vld [vmem:[%s166 + $0x1c] sm:$0xf]
      %v183 = vld [vmem:[%s166 + $0x20] sm:$0xf]
      %v184 = vld [vmem:[%s166 + $0x24] sm:$0xf]
      %v185 = vld [vmem:[%s166 + $0x28] sm:$0xf]
      %v186 = vld [vmem:[%s166 + $0x2c] sm:$0xf]
      %v187 = vld [vmem:[%s166 + $0x30] sm:$0xf]
      %v188 = vld [vmem:[%s166 + $0x34] sm:$0xf]
      %v189 = vld [vmem:[%s166 + $0x38] sm:$0xf]
      %v190 = vld [vmem:[%s166 + $0x3c] sm:$0xf]
      %v191 = vld [vmem:[%s166 + $0x40] sm:$0xf]
      %v192 = vld [vmem:[%s166 + $0x44] sm:$0xf]
      %v193 = vld [vmem:[%s166 + $0x48] sm:$0xf]
      %v194 = vld [vmem:[%s166 + $0x4c] sm:$0xf]
      %v195 = vld [vmem:[%s166 + $0x50] sm:$0xf]
      %v196 = vld [vmem:[%s166 + $0x54] sm:$0xf]
      %v197 = vld [vmem:[%s166 + $0x58] sm:$0xf]
      %v198 = vld [vmem:[%s166 + $0x5c] sm:$0xf]
      %v199 = vld [vmem:[%s166 + $0x60] sm:$0xf]
      %v200 = vld [vmem:[%s166 + $0x64] sm:$0xf]
      %v201 = vld [vmem:[%s166 + $0x68] sm:$0xf]
      %v202 = vld [vmem:[%s166 + $0x6c] sm:$0xf]
      %v203 = vld [vmem:[%s166 + $0x70] sm:$0xf]
      %v204 = vld [vmem:[%s166 + $0x74] sm:$0xf]
      %v205 = vld [vmem:[%s166 + $0x78] sm:$0xf]
      %v206 = vld [vmem:[%s166 + $0x7c] sm:$0xf]
      %v207 = vld [vmem:[%s1] sm:$0xf]
      %v208 = vld [vmem:[%s1 + $0x4] sm:$0xf]
      %v209 = vld [vmem:[%s1 + $0x8] sm:$0xf]
      %v210 = vld [vmem:[%s1 + $0xc] sm:$0xf]
      %v211 = vld [vmem:[%s1 + $0x10] sm:$0xf]
      %v212 = vld [vmem:[%s1 + $0x14] sm:$0xf]
      %v213 = vld [vmem:[%s1 + $0x18] sm:$0xf]
      %v214 = vld [vmem:[%s1 + $0x1c] sm:$0xf]
      %v215 = vld [vmem:[%s1 + $0x20] sm:$0xf]
      %v216 = vld [vmem:[%s1 + $0x24] sm:$0x3]
      %v217 = vld [vmem:[%s2] sm:$0x1]
      %v219 = vlaneseq
      %v220 = vshrl.u32 %v219, 7
      %v221 = vsub.s32 0, %v220
      %v222 = vrot.slane %v217, %v221
      %v256 = vunpack.c.l.b16 %v175
      %v257 = vunpack.c.l.b16 %v176
      %v258 = vunpack.c.l.b16 %v177
      %v259 = vunpack.c.l.b16 %v178
      %v260 = vunpack.c.l.b16 %v179
      %v261 = vunpack.c.l.b16 %v180
      %v262 = vunpack.c.l.b16 %v181
      %v263 = vunpack.c.l.b16 %v182
      %v264 = vunpack.c.l.b16 %v183
      %v265 = vunpack.c.l.b16 %v184
      %v266 = vunpack.c.l.b16 %v185
      %v267 = vunpack.c.l.b16 %v186
      %v268 = vunpack.c.l.b16 %v187
      %v269 = vunpack.c.l.b16 %v188
      %v270 = vunpack.c.l.b16 %v189
      %v271 = vunpack.c.l.b16 %v190
      %v272 = vunpack.c.l.b16 %v191
      %v273 = vunpack.c.l.b16 %v192
      %v274 = vunpack.c.l.b16 %v193
      %v275 = vunpack.c.l.b16 %v194
      %v276 = vunpack.c.l.b16 %v195
      %v277 = vunpack.c.l.b16 %v196
      %v278 = vunpack.c.l.b16 %v197
      %v279 = vunpack.c.l.b16 %v198
      %v280 = vunpack.c.l.b16 %v199
      %v281 = vunpack.c.l.b16 %v200
      %v282 = vunpack.c.l.b16 %v201
      %v283 = vunpack.c.l.b16 %v202
      %v284 = vunpack.c.l.b16 %v203
      %v285 = vunpack.c.l.b16 %v204
      %v286 = vunpack.c.l.b16 %v205
      %v287 = vunpack.c.l.b16 %v206
      %v288 = vpack.c.b16 %v257, %v256
      %v289 = vpack.c.b16 %v259, %v258
      %v290 = vpack.c.b16 %v261, %v260
      %v291 = vpack.c.b16 %v263, %v262
      %v292 = vpack.c.b16 %v265, %v264
      %v293 = vpack.c.b16 %v267, %v266
      %v294 = vpack.c.b16 %v269, %v268
      %v295 = vpack.c.b16 %v271, %v270
      %v296 = vpack.c.b16 %v273, %v272
      %v297 = vpack.c.b16 %v275, %v274
      %v298 = vpack.c.b16 %v277, %v276
      %v299 = vpack.c.b16 %v279, %v278
      %v300 = vpack.c.b16 %v281, %v280
      %v301 = vpack.c.b16 %v283, %v282
      %v302 = vpack.c.b16 %v285, %v284
      %v303 = vpack.c.b16 %v287, %v286
      %v314 = vunpack.c.l.b16 %v207
      %v315 = vunpack.c.l.b16 %v208
      %v316 = vunpack.c.l.b16 %v209
      %v317 = vunpack.c.l.b16 %v210
      %v318 = vunpack.c.l.b16 %v211
      %v319 = vunpack.c.l.b16 %v212
      %v320 = vunpack.c.l.b16 %v213
      %v321 = vunpack.c.l.b16 %v214
      %v322 = vunpack.c.l.b16 %v215
      %v323 = vunpack.c.l.b16 %v216
      %v324 = vpack.c.b16 %v315, %v314
      %v325 = vpack.c.b16 %v317, %v316
      %v326 = vpack.c.b16 %v319, %v318
      %v327 = vpack.c.b16 %v321, %v320
      %v328 = vpack.c.b16 %v323, %v322
      %vm333 = vcmask 621568
      %v335 = vsel %vm333, %v288, 0
      %v338 = vsel %vm333, %v289, 0
      %v341 = vsel %vm333, %v290, 0
      %v344 = vsel %vm333, %v291, 0
      %v347 = vsel %vm333, %v292, 0
      %v350 = vsel %vm333, %v293, 0
      %v353 = vsel %vm333, %v294, 0
      %v356 = vsel %vm333, %v295, 0
      %v359 = vsel %vm333, %v296, 0
      %v362 = vsel %vm333, %v297, 0
      %v365 = vsel %vm333, %v298, 0
      %v368 = vsel %vm333, %v299, 0
      %v371 = vsel %vm333, %v300, 0
      %v374 = vsel %vm333, %v301, 0
      %v377 = vsel %vm333, %v302, 0
      %v380 = vsel %vm333, %v303, 0
      %vm382 = vcmask 1045504
      %v384 = vsel %vm382, %v328, 0
      %386 = vmatprep.subr.bf16.mxu0 0
      %387 = vmatpush1.bf16.msra.mxu0 %v324
      %388 = vmatprep.subr.bf16.mxu0 0
      %389 = vmatpush1.bf16.msra.mxu0 %v325
      %390 = vmatprep.subr.bf16.mxu0 0
      %391 = vmatpush1.bf16.msra.mxu0 %v326
      %392 = vmatprep.subr.bf16.mxu0 0
      %393 = vmatpush1.bf16.msra.mxu0 %v327
      %394 = vmatprep.subr.bf16.mxu0 0
      %395 = vmatpush1.bf16.msra.mxu0 %v384
      %396 = vmatprep.subr.bf16.mxu0 0
      %397 = vmatpush1.bf16.msra.mxu0 0
      %398 = vmatprep.subr.bf16.mxu0 0
      %399 = vmatpush1.bf16.msra.mxu0 0
      %400 = vmatprep.subr.bf16.mxu0 0
      %401 = vmatpush1.bf16.msra.mxu0 0
      %402 = vmatprep.subr.bf16.mxu0 0
      %403 = vmatpush1.bf16.msra.mxu0 0
      %404 = vmatprep.subr.bf16.mxu0 0
      %405 = vmatpush1.bf16.msra.mxu0 0
      %406 = vmatprep.subr.bf16.mxu0 0
      %407 = vmatpush1.bf16.msra.mxu0 0
      %408 = vmatprep.subr.bf16.mxu0 0
      %409 = vmatpush1.bf16.msra.mxu0 0
      %410 = vmatprep.subr.bf16.mxu0 0
      %411 = vmatpush1.bf16.msra.mxu0 0
      %412 = vmatprep.subr.bf16.mxu0 0
      %413 = vmatpush1.bf16.msra.mxu0 0
      %414 = vmatprep.subr.bf16.mxu0 0
      %415 = vmatpush1.bf16.msra.mxu0 0
      %416 = vmatprep.subr.bf16.mxu0 0
      %417 = vmatpush1.bf16.msra.mxu0 0
      %418 = vmatprep.mubr.bf16.mxu0 0
      %419 = vmatmul.mubr.bf16.gmra.mrb[0].mxu0 %v335
      %v420 = vpop.f32.mrb[0].mxu0
      %v421 = vadd.f32 %v222, %v420
      %v422 = vpop.f32.mrb[0].mxu0
      %v423 = vpop.f32.mrb[0].mxu0
      %v424 = vadd.f32 %v222, %v423
      %v425 = vpop.f32.mrb[0].mxu0
      %426 = vmatprep.mubr.bf16.mxu0 0
      %427 = vmatmul.mubr.bf16.gmra.mrb[0].mxu0 %v338
      %v428 = vpop.f32.mrb[0].mxu0
      %v429 = vadd.f32 %v222, %v428
      %v430 = vpop.f32.mrb[0].mxu0
      %v431 = vpop.f32.mrb[0].mxu0
      %v432 = vadd.f32 %v222, %v431
      %v433 = vpop.f32.mrb[0].mxu0
      %434 = vmatprep.mubr.bf16.mxu0 0
      %435 = vmatmul.mubr.bf16.gmra.mrb[0].mxu0 %v341
      %v436 = vpop.f32.mrb[0].mxu0
      %v437 = vadd.f32 %v222, %v436
      %v438 = vpop.f32.mrb[0].mxu0
      %v439 = vpop.f32.mrb[0].mxu0
      %v440 = vadd.f32 %v222, %v439
      %v441 = vpop.f32.mrb[0].mxu0
      %442 = vmatprep.mubr.bf16.mxu0 0
      %443 = vmatmul.mubr.bf16.gmra.mrb[0].mxu0 %v344
      %v444 = vpop.f32.mrb[0].mxu0
      %v445 = vadd.f32 %v222, %v444
      %v446 = vpop.f32.mrb[0].mxu0
      %v447 = vpop.f32.mrb[0].mxu0
      %v448 = vadd.f32 %v222, %v447
      %v449 = vpop.f32.mrb[0].mxu0
      %450 = vmatprep.mubr.bf16.mxu0 0
      %451 = vmatmul.mubr.bf16.gmra.mrb[0].mxu0 %v347
      %v452 = vpop.f32.mrb[0].mxu0
      %v453 = vadd.f32 %v222, %v452
      %v454 = vpop.f32.mrb[0].mxu0
      %v455 = vpop.f32.mrb[0].mxu0
      %v456 = vadd.f32 %v222, %v455
      %v457 = vpop.f32.mrb[0].mxu0
      %458 = vmatprep.mubr.bf16.mxu0 0
      %459 = vmatmul.mubr.bf16.gmra.mrb[0].mxu0 %v350
      %v460 = vpop.f32.mrb[0].mxu0
      %v461 = vadd.f32 %v222, %v460
      %v462 = vpop.f32.mrb[0].mxu0
      %v463 = vpop.f32.mrb[0].mxu0
      %v464 = vadd.f32 %v222, %v463
      %v465 = vpop.f32.mrb[0].mxu0
      %466 = vmatprep.mubr.bf16.mxu0 0
      %467 = vmatmul.mubr.bf16.gmra.mrb[0].mxu0 %v353
      %v468 = vpop.f32.mrb[0].mxu0
      %v469 = vadd.f32 %v222, %v468
      %v470 = vpop.f32.mrb[0].mxu0
      %v471 = vpop.f32.mrb[0].mxu0
      %v472 = vadd.f32 %v222, %v471
      %v473 = vpop.f32.mrb[0].mxu0
      %474 = vmatprep.mubr.bf16.mxu0 0
      %475 = vmatmul.mubr.bf16.gmra.mrb[0].mxu0 %v356
      %v476 = vpop.f32.mrb[0].mxu0
      %v477 = vadd.f32 %v222, %v476
      %v478 = vpop.f32.mrb[0].mxu0
      %v479 = vpop.f32.mrb[0].mxu0
      %v480 = vadd.f32 %v222, %v479
      %v481 = vpop.f32.mrb[0].mxu0
      %482 = vmatprep.mubr.bf16.mxu0 0
      %483 = vmatmul.mubr.bf16.gmra.mrb[0].mxu0 %v359
      %v484 = vpop.f32.mrb[0].mxu0
      %v485 = vadd.f32 %v222, %v484
      %v486 = vpop.f32.mrb[0].mxu0
      %v487 = vpop.f32.mrb[0].mxu0
      %v488 = vadd.f32 %v222, %v487
      %v489 = vpop.f32.mrb[0].mxu0
      %490 = vmatprep.mubr.bf16.mxu0 0
      %491 = vmatmul.mubr.bf16.gmra.mrb[0].mxu0 %v362
      %v492 = vpop.f32.mrb[0].mxu0
      %v493 = vadd.f32 %v222, %v492
      %v494 = vpop.f32.mrb[0].mxu0
      %v495 = vpop.f32.mrb[0].mxu0
      %v496 = vadd.f32 %v222, %v495
      %v497 = vpop.f32.mrb[0].mxu0
      %498 = vmatprep.mubr.bf16.mxu0 0
      %499 = vmatmul.mubr.bf16.gmra.mrb[0].mxu0 %v365
      %v500 = vpop.f32.mrb[0].mxu0
      %v501 = vadd.f32 %v222, %v500
      %v502 = vpop.f32.mrb[0].mxu0
      %v503 = vpop.f32.mrb[0].mxu0
      %v504 = vadd.f32 %v222, %v503
      %v505 = vpop.f32.mrb[0].mxu0
      %506 = vmatprep.mubr.bf16.mxu0 0
      %507 = vmatmul.mubr.bf16.gmra.mrb[0].mxu0 %v368
      %v508 = vpop.f32.mrb[0].mxu0
      %v509 = vadd.f32 %v222, %v508
      %v510 = vpop.f32.mrb[0].mxu0
      %v511 = vpop.f32.mrb[0].mxu0
      %v512 = vadd.f32 %v222, %v511
      %v513 = vpop.f32.mrb[0].mxu0
      %514 = vmatprep.mubr.bf16.mxu0 0
      %515 = vmatmul.mubr.bf16.gmra.mrb[0].mxu0 %v371
      %v516 = vpop.f32.mrb[0].mxu0
      %v517 = vadd.f32 %v222, %v516
      %v518 = vpop.f32.mrb[0].mxu0
      %v519 = vpop.f32.mrb[0].mxu0
      %v520 = vadd.f32 %v222, %v519
      %v521 = vpop.f32.mrb[0].mxu0
      %522 = vmatprep.mubr.bf16.mxu0 0
      %523 = vmatmul.mubr.bf16.gmra.mrb[0].mxu0 %v374
      %v524 = vpop.f32.mrb[0].mxu0
      %v525 = vadd.f32 %v222, %v524
      %v526 = vpop.f32.mrb[0].mxu0
      %v527 = vpop.f32.mrb[0].mxu0
      %v528 = vadd.f32 %v222, %v527
      %v529 = vpop.f32.mrb[0].mxu0
      %530 = vmatprep.mubr.bf16.mxu0 0
      %531 = vmatmul.mubr.bf16.gmra.mrb[0].mxu0 %v377
      %v532 = vpop.f32.mrb[0].mxu0
      %v533 = vadd.f32 %v222, %v532
      %v534 = vpop.f32.mrb[0].mxu0
      %v535 = vpop.f32.mrb[0].mxu0
      %v536 = vadd.f32 %v222, %v535
      %v537 = vpop.f32.mrb[0].mxu0
      %538 = vmatprep.mubr.bf16.mxu0 0
      %539 = vmatmul.mubr.bf16.gmra.mrb[0].mxu0 %v380
      %v540 = vpop.f32.mrb[0].mxu0
      %v541 = vadd.f32 %v222, %v540
      %v542 = vpop.f32.mrb[0].mxu0
      %v543 = vpop.f32.mrb[0].mxu0
      %v544 = vadd.f32 %v222, %v543
      %v545 = vpop.f32.mrb[0].mxu0
      %546 = vdwg.mxu0
      %547 = vst [vmem:[%s172] sm:$0xff] %v421
      %548 = vst [vmem:[%s172 + $0x8] sm:$0xff] %v424
      %549 = vst [vmem:[%s172 + $0x10] sm:$0xff] %v429
      %550 = vst [vmem:[%s172 + $0x18] sm:$0xff] %v432
      %551 = vst [vmem:[%s172 + $0x20] sm:$0xff] %v437
      %552 = vst [vmem:[%s172 + $0x28] sm:$0xff] %v440
      %553 = vst [vmem:[%s172 + $0x30] sm:$0xff] %v445
      %554 = vst [vmem:[%s172 + $0x38] sm:$0xff] %v448
      %555 = vst [vmem:[%s172 + $0x40] sm:$0xff] %v453
      %556 = vst [vmem:[%s172 + $0x48] sm:$0xff] %v456
      %557 = vst [vmem:[%s172 + $0x50] sm:$0xff] %v461
      %558 = vst [vmem:[%s172 + $0x58] sm:$0xff] %v464
      %559 = vst [vmem:[%s172 + $0x60] sm:$0xff] %v469
      %560 = vst [vmem:[%s172 + $0x68] sm:$0xff] %v472
      %561 = vst [vmem:[%s172 + $0x70] sm:$0xff] %v477
      %562 = vst [vmem:[%s172 + $0x78] sm:$0xff] %v480
      %563 = vst [vmem:[%s172 + $0x80] sm:$0xff] %v485
      %564 = vst [vmem:[%s172 + $0x88] sm:$0xff] %v488
      %565 = vst [vmem:[%s172 + $0x90] sm:$0xff] %v493
      %566 = vst [vmem:[%s172 + $0x98] sm:$0xff] %v496
      %567 = vst [vmem:[%s172 + $0xa0] sm:$0xff] %v501
      %568 = vst [vmem:[%s172 + $0xa8] sm:$0xff] %v504
      %569 = vst [vmem:[%s172 + $0xb0] sm:$0xff] %v509
      %570 = vst [vmem:[%s172 + $0xb8] sm:$0xff] %v512
      %571 = vst [vmem:[%s172 + $0xc0] sm:$0xff] %v517
      %572 = vst [vmem:[%s172 + $0xc8] sm:$0xff] %v520
      %573 = vst [vmem:[%s172 + $0xd0] sm:$0xff] %v525
      %574 = vst [vmem:[%s172 + $0xd8] sm:$0xff] %v528
      %575 = vst [vmem:[%s172 + $0xe0] sm:$0xff] %v533
      %576 = vst [vmem:[%s172 + $0xe8] sm:$0xff] %v536
      %577 = vst [vmem:[%s172 + $0xf0] sm:$0xff] %v541
      %578 = vst [vmem:[%s172 + $0xf8] sm:$0xff] %v544
      %s579 = smul.u32 32, %s14
      %p580 = scmp.lt.s32.totalorder %s579, 63
      %s581 = scalar_select %p580, %s579, 63
      %s582 = smul.addr %s581, 8
      %s583 = scalar_lea.vmem %s3, %s582
      // Predicated region
      $region33: #{resblk_forward.3} parent=31 // pred_check
        %p584 = pneg %p100
      $region34: #{resblk_forward.3} parent=31 // pred_check_branch
        %586 = sbr.rel (%p584) target = $region36
      $region35: #{resblk_forward.3} parent=31 // pred_region
        %s587 = smul.u32 32, %s14
      $region36: #{resblk_forward.3} parent=31 // pred_fallthru
        _
    $region32: #{resblk_forward.3} parent=5 // pred_fallthru
      _
    %p588 = scmp.le.s32.totalorder 2, %s9
    // Predicated region
    $region37: #{resblk_forward.3} parent=5 // pred_check
      %p589 = pneg %p588
    $region38: #{resblk_forward.3} parent=5 // pred_check_branch
      %591 = sbr.rel (%p589) target = $region40
    $region39: #{resblk_forward.3} parent=5 // pred_region
      %s592 = ssub.s32 %s9, 2
      // Predicated region
      $region41: #{resblk_forward.3} parent=39 // pred_check
        %p593 = pneg %p106
      $region42: #{resblk_forward.3} parent=39 // pred_check_branch
        %595 = sbr.rel (%p593) target = $region44
      $region43: #{resblk_forward.3} parent=39 // pred_region
        %s596 = smul.u32 32, %s15
        %p597 = scmp.lt.s32.totalorder %s596, 63
        %s598 = scalar_select %p597, %s596, 63
        %s599 = smul.addr %s598, 8
        %s600 = scalar_lea.vmem %s3, %s599
      $region44: #{resblk_forward.3} parent=39 // pred_fallthru
        _
    $region40: #{resblk_forward.3} parent=5 // pred_fallthru
      _
  $region6: #{resblk_forward.3} parent=0 // loop_footer
    %s13 = sadd.s32 1, %s9
  $region7: #{resblk_forward.3} parent=0 // loop_footer_branch
    %8 = sbr.rel target = $region3
  $region8: #{resblk_forward.3} parent=0 // loop_exit
    _

</llo_original>
